<compile_context>
chip_gen: v7x
topology: tpu7x:2x2x1
jax: 0.10.0
libtpu: 0.0.40
codegen_flags: <defaults>
</compile_context>

<pallas_src>
import numpy as np
import jax
import jax.numpy as jnp
from jax.experimental import pallas as pl
from jax.experimental.pallas import tpu as pltpu

LEAK = 0.1      # LeakyReLU negative slope
KIN = 8         # padded number of input rows (>= sum(periods) + 1 ones-row)
TT_MAX = 4096   # max time positions (lanes) per grid step


def _leaky(h):
    # max(h, 0.1*h) == LeakyReLU(0.1) for leak in (0,1); 2 VALU ops/elem.
    return jnp.maximum(h, LEAK * h)


def _round_up(v, m):
    return ((v + m - 1) // m) * m


def _cdiv(a, b):
    return -(-a // b)


def _elementwise_dtype():
    """bf16 elementwise on chips with a bf16 VPU (v6e+); f32 otherwise."""
    try:
        kind = jax.devices()[0].device_kind.lower()
    except Exception:
        return jnp.float32
    if any(tag in kind for tag in ("v2", "v3", "v4", "v5")):
        return jnp.float32
    return jnp.bfloat16


# --------------------------------- kernel ------------------------------------
def _make_kernel(compute_dtype):
    def disc_kernel(x_ref, w1_ref, w2_ref, w3_ref, wf_ref, b_ref, out_ref):
        """One fused step: x (KIN, TT) bf16 -> out (8, TT) f32.

        Matmuls run in bf16 with f32 MXU accumulation; bias add + LeakyReLU run
        in `compute_dtype` (bf16 on v6e/v7x, f32 on v5e).  Layer-1 bias is
        folded into w1 via the ones row of x; conv4 + final conv are pre-fused.
        """
        c2 = w2_ref.shape[0]
        c3 = w3_ref.shape[0]
        b2 = b_ref[0:c2, :]
        b3 = b_ref[c2:c2 + c3, :]
        bfin = b_ref[c2 + c3:c2 + c3 + 8, :].astype(jnp.float32)

        h = jnp.dot(w1_ref[...], x_ref[...],
                    preferred_element_type=jnp.float32)            # (32n, TT)
        h = _leaky(h.astype(compute_dtype))                        # b1 folded via ones row
        h = jnp.dot(w2_ref[...], h.astype(jnp.bfloat16),
                    preferred_element_type=jnp.float32)            # (64n, TT)
        h = _leaky(h.astype(compute_dtype) + b2)
        h = jnp.dot(w3_ref[...], h.astype(jnp.bfloat16),
                    preferred_element_type=jnp.float32)            # (128n, TT)
        h = _leaky(h.astype(compute_dtype) + b3)
        out = jnp.dot(wf_ref[...], h.astype(jnp.bfloat16),
                      preferred_element_type=jnp.float32)          # (8, TT)
        out_ref[...] = (out + bfin).astype(out_ref.dtype)
    return disc_kernel


# ------------------------------ parameters -----------------------------------
def _block_diag(blocks):
    rows = sum(b.shape[0] for b in blocks)
    cols = sum(b.shape[1] for b in blocks)
    out = jnp.zeros((rows, cols), blocks[0].dtype)
    r = c = 0
    for b in blocks:
        out = out.at[r:r + b.shape[0], c:c + b.shape[1]].set(b)
        r += b.shape[0]
        c += b.shape[1]
    return out


def make_merged_params(raw_convs, raw_final, periods):
    """Fold the per-period conv stacks + final conv into one block-diagonal matmul chain."""
    n = len(periods)
    assert sum(periods) + 1 <= KIN   # +1 row reserved for the folded-bias ones row
    for p in periods:
        # conv1 (k=5, stride=3, pad=2) collapses H=p to 1 only for p <= 3.
        assert p <= 3, "this single-row reformulation requires period <= 3"

    wf_raw, bf_raw = raw_final
    wf_eff = wf_raw[:, :, 1, 0]                       # (1, 256n) centre tap

    ones_col = sum(periods)                           # the host sets this input row to 1.0
    w1m = jnp.zeros((32 * n, KIN), jnp.float32)
    b1s, w2s, b2s, w3s, b3s, wf_cols = [], [], [], [], [], []
    bias_total = bf_raw.reshape(1, 1)
    off = 0
    for i, p in enumerate(periods):
        w1, b1, w2, b2, w3, b3, w4, b4 = raw_convs[i]
        # conv1 output row 0 sees input rows 0..p-1 through kernel taps 2..2+p-1
        w1m = w1m.at[32 * i:32 * (i + 1), off:off + p].set(w1[:, 0, 2:2 + p, 0])
        off += p
        b1s.append(b1)
        w2s.append(w2[:, :, 2, 0])                    # (64, 32)  centre tap
        b2s.append(b2)
        w3s.append(w3[:, :, 2, 0])                    # (128, 64) centre tap
        b3s.append(b3)
        w4e = w4[:, :, 1, 0]                          # (256, 128) centre tap
        wf_slice = wf_eff[:, 256 * i:256 * (i + 1)]   # (1, 256)
        # Exact fusion of conv4 with the final conv (no activation in between).
        wf_cols.append(wf_slice @ w4e)                # (1, 128)
        bias_total = bias_total + wf_slice @ b4.reshape(256, 1)

    # Fold b1 into w1: the ones row of the input picks up this column.
    w1m = w1m.at[:, ones_col].set(jnp.concatenate(b1s))

    w2m = _block_diag(w2s)                            # (64n, 32n)
    w3m = _block_diag(w3s)                            # (128n, 64n)
    wfm = jnp.concatenate(wf_cols, axis=1)            # (1, 128n)
    # Pad the fused final weight/bias to 8 sublane rows (row 0 is the real one)
    # so the output block is a plain unmasked (8, TT) lane-dense store.
    wfm = jnp.pad(wfm, ((0, 7), (0, 0)))
    bfm = jnp.pad(bias_total, ((0, 7), (0, 0)))

    return {
        "w1": w1m.astype(jnp.bfloat16),
        "w2": w2m.astype(jnp.bfloat16),
        "w3": w3m.astype(jnp.bfloat16),
        "wf": wfm.astype(jnp.bfloat16),
        "b2": jnp.concatenate(b2s).reshape(-1, 1),
        "b3": jnp.concatenate(b3s).reshape(-1, 1),
        "bf": bfm,
    }


def init_params(periods, key):
    """Deterministic parameters with the same shapes as the PyTorch module."""
    specs = [(32, 1, 5), (64, 32, 5), (128, 64, 5), (256, 128, 3)]   # (out_c, in_c, kh)
    keys = jax.random.split(key, len(periods) + 1)

    raw_convs = []
    for i, _ in enumerate(periods):
        lkeys = jax.random.split(keys[i], len(specs))
        layers = []
        for (oc, ic, kh), lk in zip(specs, lkeys):
            k1, k2 = jax.random.split(lk)
            scale = 1.0 / np.sqrt(ic * kh)
            w = jax.random.uniform(k1, (oc, ic, kh, 1), jnp.float32, -scale, scale)
            b = jax.random.uniform(k2, (oc,), jnp.float32, -scale, scale)
            layers += [w, b]
        raw_convs.append(tuple(layers))

    kf1, kf2 = jax.random.split(keys[-1])
    c_cat = 256 * len(periods)
    fscale = 1.0 / np.sqrt(c_cat * 3)
    wf = jax.random.uniform(kf1, (1, c_cat, 3, 1), jnp.float32, -fscale, fscale)
    bf = jax.random.uniform(kf2, (1,), jnp.float32, -fscale, fscale)

    return {"raw_convs": raw_convs, "raw_final": (wf, bf),
            "merged": make_merged_params(raw_convs, (wf, bf), periods)}


# ------------------------------- forward --------------------------------------
def discriminator_forward_pallas(x, params, periods, compute_dtype=None):
    """x: (B, 1, L) float32 (matches PyTorch (N, C=1, L)). Returns [ (B, 1, T_min) ]."""
    B, C, L = x.shape
    assert C == 1  # TODO(synk): the PyTorch C>1 permute/reshape interleave is not modeled.

    if compute_dtype is None:
        compute_dtype = _elementwise_dtype()

    t_min = min((L + ((-L) % p)) // p for p in periods)
    rows = B * t_min

    # Choose the number of grid steps, then size tt to balance padding waste:
    # large tiles amortize the ~0.35us per-step overhead, balanced tiles avoid
    # computing a near-empty final step.
    steps = max(1, _cdiv(rows, TT_MAX))
    tt = _round_up(_cdiv(rows, steps), 128)
    rows_pad = steps * tt

    # Channel-major input: row c holds one period phase, column r = b*T_min + t
    # holds sample x_padded[b, 0, t*p + j] (branch-0 rows first).  The last used
    # row is all-ones so w1's extra column applies b1 "for free" on the MXU.
    blocks = []
    for p in periods:
        pad = (-L) % p
        xp = jnp.pad(x, ((0, 0), (0, 0), (0, pad)))
        xv = xp.reshape(B, 1, -1, p)[:, 0, :t_min, :]              # (B, t_min, p)
        blocks.append(jnp.transpose(xv, (2, 0, 1)).reshape(p, rows))
    blocks.append(jnp.ones((1, rows), x.dtype))                    # ones row (b1 fold)
    xin = jnp.concatenate(blocks, axis=0)                          # (sum p + 1, rows)
    xin = jnp.pad(xin, ((0, KIN - xin.shape[0]), (0, rows_pad - rows)))
    xin = xin.astype(jnp.bfloat16)   # host-side cast: halves input DMA, no in-kernel pack

    m = params["merged"]
    bvec = jnp.concatenate([m["b2"], m["b3"], m["bf"]], axis=0).astype(compute_dtype)
    weights = (m["w1"], m["w2"], m["w3"], m["wf"], bvec)

    c1, c2, c3 = m["w1"].shape[0], m["w2"].shape[0], m["w3"].shape[0]
    flops_per_col = 2 * (c1 * KIN + c2 * c1 + c3 * c2 + 8 * c3)
    bytes_accessed = int(xin.size) * 2 + 8 * rows_pad * 4 \
        + sum(int(np.prod(w.shape)) * w.dtype.itemsize for w in weights)

    in_specs = [pl.BlockSpec((KIN, tt), lambda i: (0, i))]
    in_specs += [pl.BlockSpec(w.shape, lambda i: (0, 0)) for w in weights]

    out = pl.pallas_call(
        _make_kernel(compute_dtype),
        out_shape=jax.ShapeDtypeStruct((8, rows_pad), jnp.float32),
        grid=(steps,),
        in_specs=in_specs,
        out_specs=pl.BlockSpec((8, tt), lambda i: (0, i)),
        compiler_params=pltpu.CompilerParams(
            dimension_semantics=("parallel",),
            vmem_limit_bytes=32 * 1024 * 1024),
        cost_estimate=pl.CostEstimate(
            flops=flops_per_col * rows_pad,
            transcendentals=0,
            bytes_accessed=bytes_accessed),
    )(xin, *weights)

    # final_out: (B, 1, 1, T_min) -> squeeze(1) -> (B, 1, T_min)
    return [out[0, :rows].reshape(B, 1, t_min)]


# ----------------------------- pure-JAX reference ------------------------------
def _torch_conv2d(x, w, b, stride, padding):
    out = jax.lax.conv_general_dilated(
        x, w, window_strides=stride,
        padding=[(padding[0], padding[0]), (padding[1], padding[1])],
        dimension_numbers=("NCHW", "OIHW", "NCHW"))
    return out + b.reshape(1, -1, 1, 1)


def _leaky_ref(h):
    return jnp.where(h > 0, h, 0.1 * h)


def discriminator_forward_ref(x, params, periods):
    B = x.shape[0]
    outs = []
    for i, p in enumerate(periods):
        L = x.shape[-1]
        pad_len = (p - L % p) % p
        xpd = jnp.pad(x, ((0, 0), (0, 0), (0, pad_len)))
        xv = xpd.reshape(B, x.shape[1], -1, p)
        xperm = jnp.transpose(xv, (0, 1, 3, 2))
        xr = xperm.reshape(B, 1, p, -1)
        w1, b1, w2, b2, w3, b3, w4, b4 = params["raw_convs"][i]
        h = _leaky_ref(_torch_conv2d(xr, w1, b1, (3, 1), (2, 0)))
        h = _leaky_ref(_torch_conv2d(h, w2, b2, (3, 1), (2, 0)))
        h = _leaky_ref(_torch_conv2d(h, w3, b3, (3, 1), (2, 0)))
        h = _torch_conv2d(h, w4, b4, (1, 1), (1, 0))
        outs.append(h)
    t_min = min(o.shape[-1] for o in outs)
    outs = [o[..., :t_min] for o in outs]
    cat = jnp.concatenate(outs, axis=1)
    wf, bf = params["raw_final"]
    fin = _torch_conv2d(cat, wf, bf, (1, 1), (1, 0))   # (B, 1, 1, T_min)
    return [jnp.squeeze(fin, axis=1)]                  # (B, 1, T_min)


if __name__ == "__main__":
    periods = [2, 3]
    key = jax.random.PRNGKey(0)
    kx, kp = jax.random.split(key)
    B, L = 2, 16
    x = jax.random.normal(kx, (B, 1, L), jnp.float32)

    params = init_params(periods, kp)

    out = discriminator_forward_pallas(x, params, periods)
    out = [jax.block_until_ready(o) for o in out]

    ref = discriminator_forward_ref(x, params, periods)
    np.testing.assert_allclose(np.asarray(out[0]), np.asarray(ref[0]), rtol=1e-2, atol=1e-2)

    print("KERNEL_OK")
</pallas_src>

<mosaic_0001>
module attributes {stable_mosaic.version = 11 : i64} {
  func.func @disc_kernel(%arg0: i32, %arg1: memref<8x128xbf16, #tpu.memory_space<vmem>>, %arg2: memref<64x8xbf16, #tpu.memory_space<vmem>>, %arg3: memref<128x64xbf16, #tpu.memory_space<vmem>>, %arg4: memref<256x128xbf16, #tpu.memory_space<vmem>>, %arg5: memref<8x256xbf16, #tpu.memory_space<vmem>>, %arg6: memref<392x1xbf16, #tpu.memory_space<vmem>>, %arg7: memref<8x128xf32, #tpu.memory_space<vmem>>) attributes {dimension_semantics = [#tpu.dimension_semantics<parallel>], iteration_bounds = array<i64: 1>, scalar_prefetch = 0 : i64, scratch_operands = 0 : i64, tpu.core_type = #tpu.core_type<tc>, window_params = [{transform_indices = @transform_0, window_bounds = array<i64: 8, 128>}, {pipeline_mode = #tpu.pipeline_mode<synchronous>, transform_indices = @transform_1, window_bounds = array<i64: 64, 8>}, {pipeline_mode = #tpu.pipeline_mode<synchronous>, transform_indices = @transform_2, window_bounds = array<i64: 128, 64>}, {pipeline_mode = #tpu.pipeline_mode<synchronous>, transform_indices = @transform_3, window_bounds = array<i64: 256, 128>}, {pipeline_mode = #tpu.pipeline_mode<synchronous>, transform_indices = @transform_4, window_bounds = array<i64: 8, 256>}, {pipeline_mode = #tpu.pipeline_mode<synchronous>, transform_indices = @transform_5, window_bounds = array<i64: 392, 1>}, {transform_indices = @transform_6, window_bounds = array<i64: 8, 128>}]} {
    %c0 = arith.constant 0 : index
    %c0_0 = arith.constant 0 : index
    %0 = vector.load %arg6[%c0, %c0_0] : memref<392x1xbf16, #tpu.memory_space<vmem>>, vector<128x1xbf16>
    %c128 = arith.constant 128 : index
    %c0_1 = arith.constant 0 : index
    %1 = vector.load %arg6[%c128, %c0_1] : memref<392x1xbf16, #tpu.memory_space<vmem>>, vector<256x1xbf16>
    %c384 = arith.constant 384 : index
    %c0_2 = arith.constant 0 : index
    %2 = vector.load %arg6[%c384, %c0_2] : memref<392x1xbf16, #tpu.memory_space<vmem>>, vector<8x1xbf16>
    %3 = arith.extf %2 : vector<8x1xbf16> to vector<8x1xf32>
    %c0_3 = arith.constant 0 : index
    %c0_4 = arith.constant 0 : index
    %4 = vector.load %arg2[%c0_3, %c0_4] : memref<64x8xbf16, #tpu.memory_space<vmem>>, vector<64x8xbf16>
    %c0_5 = arith.constant 0 : index
    %c0_6 = arith.constant 0 : index
    %5 = vector.load %arg1[%c0_5, %c0_6] : memref<8x128xbf16, #tpu.memory_space<vmem>>, vector<8x128xbf16>
    %cst = arith.constant dense<0.000000e+00> : vector<64x128xf32>
    %6 = tpu.matmul %4, %5, %cst {dimension_numbers = #tpu.dot_dimension_numbers<[1], [0], [0], [1], [0, 0, 1, 1], [], []>} : vector<64x8xbf16>, vector<8x128xbf16>, vector<64x128xf32> -> vector<64x128xf32>
    %7 = arith.truncf %6 : vector<64x128xf32> to vector<64x128xbf16>
    %cst_7 = arith.constant 1.000980e-01 : bf16
    %8 = vector.broadcast %cst_7 : bf16 to vector<64x128xbf16>
    %9 = arith.mulf %8, %7 : vector<64x128xbf16>
    %10 = arith.maximumf %7, %9 : vector<64x128xbf16>
    %c0_8 = arith.constant 0 : index
    %c0_9 = arith.constant 0 : index
    %11 = vector.load %arg3[%c0_8, %c0_9] : memref<128x64xbf16, #tpu.memory_space<vmem>>, vector<128x64xbf16>
    %cst_10 = arith.constant dense<0.000000e+00> : vector<128x128xf32>
    %12 = tpu.matmul %11, %10, %cst_10 {dimension_numbers = #tpu.dot_dimension_numbers<[1], [0], [0], [1], [0, 0, 1, 1], [], []>} : vector<128x64xbf16>, vector<64x128xbf16>, vector<128x128xf32> -> vector<128x128xf32>
    %13 = arith.truncf %12 : vector<128x128xf32> to vector<128x128xbf16>
    %14 = vector.broadcast %0 : vector<128x1xbf16> to vector<128x128xbf16>
    %15 = arith.addf %13, %14 : vector<128x128xbf16>
    %cst_11 = arith.constant 1.000980e-01 : bf16
    %16 = vector.broadcast %cst_11 : bf16 to vector<128x128xbf16>
    %17 = arith.mulf %16, %15 : vector<128x128xbf16>
    %18 = arith.maximumf %15, %17 : vector<128x128xbf16>
    %c0_12 = arith.constant 0 : index
    %c0_13 = arith.constant 0 : index
    %19 = vector.load %arg4[%c0_12, %c0_13] : memref<256x128xbf16, #tpu.memory_space<vmem>>, vector<256x128xbf16>
    %cst_14 = arith.constant dense<0.000000e+00> : vector<256x128xf32>
    %20 = tpu.matmul %19, %18, %cst_14 {dimension_numbers = #tpu.dot_dimension_numbers<[1], [0], [0], [1], [0, 0, 1, 1], [], []>} : vector<256x128xbf16>, vector<128x128xbf16>, vector<256x128xf32> -> vector<256x128xf32>
    %21 = arith.truncf %20 : vector<256x128xf32> to vector<256x128xbf16>
    %22 = vector.broadcast %1 : vector<256x1xbf16> to vector<256x128xbf16>
    %23 = arith.addf %21, %22 : vector<256x128xbf16>
    %cst_15 = arith.constant 1.000980e-01 : bf16
    %24 = vector.broadcast %cst_15 : bf16 to vector<256x128xbf16>
    %25 = arith.mulf %24, %23 : vector<256x128xbf16>
    %26 = arith.maximumf %23, %25 : vector<256x128xbf16>
    %c0_16 = arith.constant 0 : index
    %c0_17 = arith.constant 0 : index
    %27 = vector.load %arg5[%c0_16, %c0_17] : memref<8x256xbf16, #tpu.memory_space<vmem>>, vector<8x256xbf16>
    %cst_18 = arith.constant dense<0.000000e+00> : vector<8x128xf32>
    %28 = tpu.matmul %27, %26, %cst_18 {dimension_numbers = #tpu.dot_dimension_numbers<[1], [0], [0], [1], [0, 0, 1, 1], [], []>} : vector<8x256xbf16>, vector<256x128xbf16>, vector<8x128xf32> -> vector<8x128xf32>
    %29 = vector.broadcast %3 : vector<8x1xf32> to vector<8x128xf32>
    %30 = arith.addf %28, %29 : vector<8x128xf32>
    %c0_19 = arith.constant 0 : index
    %c0_20 = arith.constant 0 : index
    %31 = vector.load %arg7[%c0_19, %c0_20] : memref<8x128xf32, #tpu.memory_space<vmem>>, vector<8x128xf32>
    tpu.vector_store %arg7[%c0_19, %c0_20], %30 {strides = array<i32>} : memref<8x128xf32, #tpu.memory_space<vmem>>, vector<8x128xf32>,
    return
  }
  func.func @transform_0(%arg0: i32) -> (i32, i32) {
    %c0_i32 = arith.constant 0 : i32
    %c0_i32_0 = arith.constant 0 : i32
    return %c0_i32, %arg0 : i32, i32
  }
  func.func @transform_1(%arg0: i32) -> (i32, i32) {
    %c0_i32 = arith.constant 0 : i32
    %c0_i32_0 = arith.constant 0 : i32
    %c0_i32_1 = arith.constant 0 : i32
    return %c0_i32, %c0_i32_0 : i32, i32
  }
  func.func @transform_2(%arg0: i32) -> (i32, i32) {
    %c0_i32 = arith.constant 0 : i32
    %c0_i32_0 = arith.constant 0 : i32
    %c0_i32_1 = arith.constant 0 : i32
    return %c0_i32, %c0_i32_0 : i32, i32
  }
  func.func @transform_3(%arg0: i32) -> (i32, i32) {
    %c0_i32 = arith.constant 0 : i32
    %c0_i32_0 = arith.constant 0 : i32
    %c0_i32_1 = arith.constant 0 : i32
    return %c0_i32, %c0_i32_0 : i32, i32
  }
  func.func @transform_4(%arg0: i32) -> (i32, i32) {
    %c0_i32 = arith.constant 0 : i32
    %c0_i32_0 = arith.constant 0 : i32
    %c0_i32_1 = arith.constant 0 : i32
    return %c0_i32, %c0_i32_0 : i32, i32
  }
  func.func @transform_5(%arg0: i32) -> (i32, i32) {
    %c0_i32 = arith.constant 0 : i32
    %c0_i32_0 = arith.constant 0 : i32
    %c0_i32_1 = arith.constant 0 : i32
    return %c0_i32, %c0_i32_0 : i32, i32
  }
  func.func @transform_6(%arg0: i32) -> (i32, i32) {
    %c0_i32 = arith.constant 0 : i32
    %c0_i32_0 = arith.constant 0 : i32
    return %c0_i32, %arg0 : i32, i32
  }
}

</mosaic_0001>

<llo_original>
// kernel: tpu_custom_call.1
$region0: #{tpu_custom_call.1}
  #allocation0 [shape = 'u32[]', space=smem, size = 0x4, offset = 0x4, fixed_abs, tag = 'smem constant byte address 0x4 - core index']
  #allocation1 [shape = 'u32[144,128]{1,0:T(1,128)}', space=vmem, size = 0x12000, scoped, tag = 'internal scratch']
  %s0 = inlined_call_operand.vmem [shape: bf16[8,128], index: 0, kind: input, shape index: {}]
  %s1 = inlined_call_operand.vmem [shape: bf16[64,8], index: 1, kind: input, shape index: {}]
  %s2 = inlined_call_operand.vmem [shape: bf16[128,64], index: 2, kind: input, shape index: {}]
  %s3 = inlined_call_operand.vmem [shape: bf16[256,128], index: 3, kind: input, shape index: {}]
  %s4 = inlined_call_operand.vmem [shape: bf16[8,256], index: 4, kind: input, shape index: {}]
  %s5 = inlined_call_operand.vmem [shape: bf16[392,1], index: 5, kind: input, shape index: {}]
  %s6 = inlined_call_operand.hbm [shape: f32[8,128], index: 6, kind: output, shape index: {}]
  %s7 = sld [smem:[#allocation0]]
  $region34: #{tpu_custom_call.1} parent=0
    _
  %s9 = ssub.s32 1, %s7
  %s10 = scalar_select 0, %s9, %s7
  $region1: #{tpu_custom_call.1} parent=0
    #allocation2 [shape = 'u8[4096]{0}', space=vmem, size = 0x1000, scoped, tag = 'output window, operand 0, single buffered']
    #allocation3 [shape = 's32[1]{0}', space=sflag, size = 0x4, scoped, tag = 'scoped memory for tpu_custom_call.1']
    %11 = vsyncpa [#allocation3], 0
    // Predicated region
    $region2: #{tpu_custom_call.1} parent=1 // pred_check
      _
    $region3: #{tpu_custom_call.1} parent=1 // pred_check_branch
      %13 = sbr.rel (0) target = $region5
    $region4: #{tpu_custom_call.1} parent=1 // pred_region
      _
    $region5: #{tpu_custom_call.1} parent=1 // pred_fallthru
      _
    // Predicated region
    $region6: #{tpu_custom_call.1} parent=1 // pred_check
      _
    $region7: #{tpu_custom_call.1} parent=1 // pred_check_branch
      %15 = sbr.rel (0) target = $region9
    $region8: #{tpu_custom_call.1} parent=1 // pred_region
      _
    $region9: #{tpu_custom_call.1} parent=1 // pred_fallthru
      _
    // Predicated region
    $region10: #{tpu_custom_call.1} parent=1 // pred_check
      _
    $region11: #{tpu_custom_call.1} parent=1 // pred_check_branch
      %17 = sbr.rel (0) target = $region13
    $region12: #{tpu_custom_call.1} parent=1 // pred_region
      _
    $region13: #{tpu_custom_call.1} parent=1 // pred_fallthru
      _
    // Predicated region
    $region14: #{tpu_custom_call.1} parent=1 // pred_check
      _
    $region15: #{tpu_custom_call.1} parent=1 // pred_check_branch
      %19 = sbr.rel (0) target = $region17
    $region16: #{tpu_custom_call.1} parent=1 // pred_region
      _
    $region17: #{tpu_custom_call.1} parent=1 // pred_fallthru
      _
    // Predicated region
    $region18: #{tpu_custom_call.1} parent=1 // pred_check
      _
    $region19: #{tpu_custom_call.1} parent=1 // pred_check_branch
      %21 = sbr.rel (0) target = $region21
    $region20: #{tpu_custom_call.1} parent=1 // pred_region
      _
    $region21: #{tpu_custom_call.1} parent=1 // pred_fallthru
      _
    // Predicated region
    $region22: #{tpu_custom_call.1} parent=1 // pred_check
      _
    $region23: #{tpu_custom_call.1} parent=1 // pred_check_branch
      %23 = sbr.rel (0) target = $region25
    $region24: #{tpu_custom_call.1} parent=1 // pred_region
      _
    $region25: #{tpu_custom_call.1} parent=1 // pred_fallthru
      _
    %v26 = vld [vmem:[%s5] sm:$0xf]
    %v27 = vld [vmem:[%s5 + $0x4] sm:$0xf]
    %v28 = vld [vmem:[%s5 + $0x8] sm:$0xf]
    %v29 = vld [vmem:[%s5 + $0xc] sm:$0xf]
    %v30 = vld [vmem:[%s5 + $0x10] sm:$0xf]
    %v31 = vld [vmem:[%s5 + $0x14] sm:$0xf]
    %v32 = vld [vmem:[%s5 + $0x18] sm:$0xf]
    %v33 = vld [vmem:[%s5 + $0x1c] sm:$0xf]
    %v34 = vld [vmem:[%s5 + $0x20] sm:$0xf]
    %v35 = vld [vmem:[%s5 + $0x24] sm:$0xf]
    %v36 = vld [vmem:[%s5 + $0x28] sm:$0xf]
    %v37 = vld [vmem:[%s5 + $0x2c] sm:$0xf]
    %v38 = vld [vmem:[%s5 + $0x30] sm:$0xf]
    %v39 = vld [vmem:[%s5 + $0x34] sm:$0xf]
    %v40 = vld [vmem:[%s5 + $0x38] sm:$0xf]
    %v41 = vld [vmem:[%s5 + $0x3c] sm:$0xf]
    %v42 = vld [vmem:[%s5 + $0x40] sm:$0xf]
    %v43 = vld [vmem:[%s5 + $0x44] sm:$0xf]
    %v44 = vld [vmem:[%s5 + $0x48] sm:$0xf]
    %v45 = vld [vmem:[%s5 + $0x4c] sm:$0xf]
    %v46 = vld [vmem:[%s5 + $0x50] sm:$0xf]
    %v47 = vld [vmem:[%s5 + $0x54] sm:$0xf]
    %v48 = vld [vmem:[%s5 + $0x58] sm:$0xf]
    %v49 = vld [vmem:[%s5 + $0x5c] sm:$0xf]
    %v50 = vld [vmem:[%s5 + $0x60] sm:$0xf]
    %v51 = vld [vmem:[%s5 + $0x64] sm:$0xf]
    %v52 = vld [vmem:[%s5 + $0x68] sm:$0xf]
    %v53 = vld [vmem:[%s5 + $0x6c] sm:$0xf]
    %v54 = vld [vmem:[%s5 + $0x70] sm:$0xf]
    %v55 = vld [vmem:[%s5 + $0x74] sm:$0xf]
    %v56 = vld [vmem:[%s5 + $0x78] sm:$0xf]
    %v57 = vld [vmem:[%s5 + $0x7c] sm:$0xf]
    %v58 = vld [vmem:[%s5 + $0x80] sm:$0xf]
    %v59 = vld [vmem:[%s5 + $0x84] sm:$0xf]
    %v60 = vld [vmem:[%s5 + $0x88] sm:$0xf]
    %v61 = vld [vmem:[%s5 + $0x8c] sm:$0xf]
    %v62 = vld [vmem:[%s5 + $0x90] sm:$0xf]
    %v63 = vld [vmem:[%s5 + $0x94] sm:$0xf]
    %v64 = vld [vmem:[%s5 + $0x98] sm:$0xf]
    %v65 = vld [vmem:[%s5 + $0x9c] sm:$0xf]
    %v66 = vld [vmem:[%s5 + $0xa0] sm:$0xf]
    %v67 = vld [vmem:[%s5 + $0xa4] sm:$0xf]
    %v68 = vld [vmem:[%s5 + $0xa8] sm:$0xf]
    %v69 = vld [vmem:[%s5 + $0xac] sm:$0xf]
    %v70 = vld [vmem:[%s5 + $0xb0] sm:$0xf]
    %v71 = vld [vmem:[%s5 + $0xb4] sm:$0xf]
    %v72 = vld [vmem:[%s5 + $0xb8] sm:$0xf]
    %v73 = vld [vmem:[%s5 + $0xbc] sm:$0xf]
    %v74 = vld [vmem:[%s5 + $0xc0] sm:$0xf]
    %v75 = vunpack.c.l.bf16 %v74
    %v76 = vld [vmem:[%s1] sm:$0xf]
    %v77 = vld [vmem:[%s1 + $0x4] sm:$0xf]
    %v78 = vld [vmem:[%s1 + $0x8] sm:$0xf]
    %v79 = vld [vmem:[%s1 + $0xc] sm:$0xf]
    %v80 = vld [vmem:[%s1 + $0x10] sm:$0xf]
    %v81 = vld [vmem:[%s1 + $0x14] sm:$0xf]
    %v82 = vld [vmem:[%s1 + $0x18] sm:$0xf]
    %v83 = vld [vmem:[%s1 + $0x1c] sm:$0xf]
    %v84 = vld [vmem:[%s0] sm:$0xf]
    %v93 = vunpack.c.l.b16 %v76
    %v94 = vunpack.c.l.b16 %v77
    %v95 = vunpack.c.l.b16 %v78
    %v96 = vunpack.c.l.b16 %v79
    %v97 = vunpack.c.l.b16 %v80
    %v98 = vunpack.c.l.b16 %v81
    %v99 = vunpack.c.l.b16 %v82
    %v100 = vunpack.c.l.b16 %v83
    %v101 = vpack.c.b16 %v94, %v93
    %v102 = vpack.c.b16 %v96, %v95
    %v103 = vpack.c.b16 %v98, %v97
    %v104 = vpack.c.b16 %v100, %v99
    %vm105 = vcmask 64512
    %v107 = vsel %vm105, %v101, 0
    %v110 = vsel %vm105, %v102, 0
    %v113 = vsel %vm105, %v103, 0
    %v116 = vsel %vm105, %v104, 0
    %vm118 = vcmask 1043456
    %v120 = vsel %vm118, %v84, 0
    %122 = vmatprep.subr.bf16.mxu0 0
    %123 = vmatpush1.bf16.msra.mxu0 %v120
    %124 = vmatprep.subr.bf16.mxu0 0
    %125 = vmatpush1.bf16.msra.mxu0 0
    %126 = vmatprep.subr.bf16.mxu0 0
    %127 = vmatpush1.bf16.msra.mxu0 0
    %128 = vmatprep.subr.bf16.mxu0 0
    %129 = vmatpush1.bf16.msra.mxu0 0
    %130 = vmatprep.subr.bf16.mxu0 0
    %131 = vmatpush1.bf16.msra.mxu0 0
    %132 = vmatprep.subr.bf16.mxu0 0
    %133 = vmatpush1.bf16.msra.mxu0 0
    %134 = vmatprep.subr.bf16.mxu0 0
    %135 = vmatpush1.bf16.msra.mxu0 0
    %136 = vmatprep.subr.bf16.mxu0 0
    %137 = vmatpush1.bf16.msra.mxu0 0
    %138 = vmatprep.subr.bf16.mxu0 0
    %139 = vmatpush1.bf16.msra.mxu0 0
    %140 = vmatprep.subr.bf16.mxu0 0
    %141 = vmatpush1.bf16.msra.mxu0 0
    %142 = vmatprep.subr.bf16.mxu0 0
    %143 = vmatpush1.bf16.msra.mxu0 0
    %144 = vmatprep.subr.bf16.mxu0 0
    %145 = vmatpush1.bf16.msra.mxu0 0
    %146 = vmatprep.subr.bf16.mxu0 0
    %147 = vmatpush1.bf16.msra.mxu0 0
    %148 = vmatprep.subr.bf16.mxu0 0
    %149 = vmatpush1.bf16.msra.mxu0 0
    %150 = vmatprep.subr.bf16.mxu0 0
    %151 = vmatpush1.bf16.msra.mxu0 0
    %152 = vmatprep.subr.bf16.mxu0 0
    %153 = vmatpush1.bf16.msra.mxu0 0
    %154 = vmatprep.mubr.bf16.mxu0 0
    %155 = vmatmul.mubr.bf16.gmra.mrb[0].mxu0 %v107
    %v156 = vpop.f32.mrb[0].mxu0
    %v157 = vadd.f32 0.0, %v156
    %v158 = vpop.f32.mrb[0].mxu0
    %v159 = vpop.f32.mrb[0].mxu0
    %v160 = vadd.f32 0.0, %v159
    %v161 = vpop.f32.mrb[0].mxu0
    %162 = vmatprep.mubr.bf16.mxu0 0
    %163 = vmatmul.mubr.bf16.gmra.mrb[0].mxu0 %v110
    %v164 = vpop.f32.mrb[0].mxu0
    %v165 = vadd.f32 0.0, %v164
    %v166 = vpop.f32.mrb[0].mxu0
    %v167 = vpop.f32.mrb[0].mxu0
    %v168 = vadd.f32 0.0, %v167
    %v169 = vpop.f32.mrb[0].mxu0
    %170 = vmatprep.mubr.bf16.mxu0 0
    %171 = vmatmul.mubr.bf16.gmra.mrb[0].mxu0 %v113
    %v172 = vpop.f32.mrb[0].mxu0
    %v173 = vadd.f32 0.0, %v172
    %v174 = vpop.f32.mrb[0].mxu0
    %v175 = vpop.f32.mrb[0].mxu0
    %v176 = vadd.f32 0.0, %v175
    %v177 = vpop.f32.mrb[0].mxu0
    %178 = vmatprep.mubr.bf16.mxu0 0
    %179 = vmatmul.mubr.bf16.gmra.mrb[0].mxu0 %v116
    %v180 = vpop.f32.mrb[0].mxu0
    %v181 = vadd.f32 0.0, %v180
    %v182 = vpop.f32.mrb[0].mxu0
    %v183 = vpop.f32.mrb[0].mxu0
    %v184 = vadd.f32 0.0, %v183
    %v185 = vpop.f32.mrb[0].mxu0
    %186 = vdwg.mxu0
    %v187 = vpack.c.bf16 %v160, %v157
    %v188 = vpack.c.bf16 %v168, %v165
    %v189 = vpack.c.bf16 %v176, %v173
    %v190 = vpack.c.bf16 %v184, %v181
    %v191 = vmul.bf16 %v187, 1036860877
    %v192 = vmul.bf16 %v188, 1036860877
    %v193 = vmul.bf16 %v189, 1036860877
    %v194 = vmul.bf16 %v190, 1036860877
    %v195 = vmax.bf16 %v187, %v191
    %v196 = vmax.bf16 %v188, %v192
    %v197 = vmax.bf16 %v189, %v193
    %v198 = vmax.bf16 %v190, %v194
    %v199 = vld [vmem:[%s2] sm:$0xf]
    %v200 = vld [vmem:[%s2 + $0x4] sm:$0xf]
    %v201 = vld [vmem:[%s2 + $0x8] sm:$0xf]
    %v202 = vld [vmem:[%s2 + $0xc] sm:$0xf]
    %v203 = vld [vmem:[%s2 + $0x10] sm:$0xf]
    %v204 = vld [vmem:[%s2 + $0x14] sm:$0xf]
    %v205 = vld [vmem:[%s2 + $0x18] sm:$0xf]
    %v206 = vld [vmem:[%s2 + $0x1c] sm:$0xf]
    %v207 = vld [vmem:[%s2 + $0x20] sm:$0xf]
    %v208 = vld [vmem:[%s2 + $0x24] sm:$0xf]
    %v209 = vld [vmem:[%s2 + $0x28] sm:$0xf]
    %v210 = vld [vmem:[%s2 + $0x2c] sm:$0xf]
    %v211 = vld [vmem:[%s2 + $0x30] sm:$0xf]
    %v212 = vld [vmem:[%s2 + $0x34] sm:$0xf]
    %v213 = vld [vmem:[%s2 + $0x38] sm:$0xf]
    %v214 = vld [vmem:[%s2 + $0x3c] sm:$0xf]
    %v231 = vunpack.c.l.b16 %v199
    %v232 = vunpack.c.l.b16 %v200
    %v233 = vunpack.c.l.b16 %v201
    %v234 = vunpack.c.l.b16 %v202
    %v235 = vunpack.c.l.b16 %v203
    %v236 = vunpack.c.l.b16 %v204
    %v237 = vunpack.c.l.b16 %v205
    %v238 = vunpack.c.l.b16 %v206
    %v239 = vunpack.c.l.b16 %v207
    %v240 = vunpack.c.l.b16 %v208
    %v241 = vunpack.c.l.b16 %v209
    %v242 = vunpack.c.l.b16 %v210
    %v243 = vunpack.c.l.b16 %v211
    %v244 = vunpack.c.l.b16 %v212
    %v245 = vunpack.c.l.b16 %v213
    %v246 = vunpack.c.l.b16 %v214
    %v247 = vpack.c.b16 %v232, %v231
    %v248 = vpack.c.b16 %v234, %v233
    %v249 = vpack.c.b16 %v236, %v235
    %v250 = vpack.c.b16 %v238, %v237
    %v251 = vpack.c.b16 %v240, %v239
    %v252 = vpack.c.b16 %v242, %v241
    %v253 = vpack.c.b16 %v244, %v243
    %v254 = vpack.c.b16 %v246, %v245
    %vm255 = vcmask 523264
    %v257 = vsel %vm255, %v247, 0
    %v260 = vsel %vm255, %v248, 0
    %v263 = vsel %vm255, %v249, 0
    %v266 = vsel %vm255, %v250, 0
    %v269 = vsel %vm255, %v251, 0
    %v272 = vsel %vm255, %v252, 0
    %v275 = vsel %vm255, %v253, 0
    %v278 = vsel %vm255, %v254, 0
    %280 = vmatprep.subr.bf16.mxu0 0
    %281 = vmatpush1.bf16.msra.mxu0 %v195
    %282 = vmatprep.subr.bf16.mxu0 0
    %283 = vmatpush1.bf16.msra.mxu0 %v196
    %284 = vmatprep.subr.bf16.mxu0 0
    %285 = vmatpush1.bf16.msra.mxu0 %v197
    %286 = vmatprep.subr.bf16.mxu0 0
    %287 = vmatpush1.bf16.msra.mxu0 %v198
    %288 = vmatprep.subr.bf16.mxu0 0
    %289 = vmatpush1.bf16.msra.mxu0 0
    %290 = vmatprep.subr.bf16.mxu0 0
    %291 = vmatpush1.bf16.msra.mxu0 0
    %292 = vmatprep.subr.bf16.mxu0 0
    %293 = vmatpush1.bf16.msra.mxu0 0
    %294 = vmatprep.subr.bf16.mxu0 0
    %295 = vmatpush1.bf16.msra.mxu0 0
    %296 = vmatprep.subr.bf16.mxu0 0
    %297 = vmatpush1.bf16.msra.mxu0 0
    %298 = vmatprep.subr.bf16.mxu0 0
    %299 = vmatpush1.bf16.msra.mxu0 0
    %300 = vmatprep.subr.bf16.mxu0 0
    %301 = vmatpush1.bf16.msra.mxu0 0
    %302 = vmatprep.subr.bf16.mxu0 0
    %303 = vmatpush1.bf16.msra.mxu0 0
    %304 = vmatprep.subr.bf16.mxu0 0
    %305 = vmatpush1.bf16.msra.mxu0 0
    %306 = vmatprep.subr.bf16.mxu0 0
    %307 = vmatpush1.bf16.msra.mxu0 0
    %308 = vmatprep.subr.bf16.mxu0 0
    %309 = vmatpush1.bf16.msra.mxu0 0
    %310 = vmatprep.subr.bf16.mxu0 0
    %311 = vmatpush1.bf16.msra.mxu0 0
    %312 = vmatprep.mubr.bf16.mxu0 0
    %313 = vmatmul.mubr.bf16.gmra.mrb[0].mxu0 %v257
    %v314 = vpop.f32.mrb[0].mxu0
    %v315 = vadd.f32 0.0, %v314
    %v316 = vpop.f32.mrb[0].mxu0
    %v317 = vpop.f32.mrb[0].mxu0
    %v318 = vadd.f32 0.0, %v317
    %v319 = vpop.f32.mrb[0].mxu0
    %320 = vmatprep.mubr.bf16.mxu0 0
    %321 = vmatmul.mubr.bf16.gmra.mrb[0].mxu0 %v260
    %v322 = vpop.f32.mrb[0].mxu0
    %v323 = vadd.f32 0.0, %v322
    %v324 = vpop.f32.mrb[0].mxu0
    %v325 = vpop.f32.mrb[0].mxu0
    %v326 = vadd.f32 0.0, %v325
    %v327 = vpop.f32.mrb[0].mxu0
    %328 = vmatprep.mubr.bf16.mxu0 0
    %329 = vmatmul.mubr.bf16.gmra.mrb[0].mxu0 %v263
    %v330 = vpop.f32.mrb[0].mxu0
    %v331 = vadd.f32 0.0, %v330
    %v332 = vpop.f32.mrb[0].mxu0
    %v333 = vpop.f32.mrb[0].mxu0
    %v334 = vadd.f32 0.0, %v333
    %v335 = vpop.f32.mrb[0].mxu0
    %336 = vmatprep.mubr.bf16.mxu0 0
    %337 = vmatmul.mubr.bf16.gmra.mrb[0].mxu0 %v266
    %v338 = vpop.f32.mrb[0].mxu0
    %v339 = vadd.f32 0.0, %v338
    %v340 = vpop.f32.mrb[0].mxu0
    %v341 = vpop.f32.mrb[0].mxu0
    %v342 = vadd.f32 0.0, %v341
    %v343 = vpop.f32.mrb[0].mxu0
    %344 = vmatprep.mubr.bf16.mxu0 0
    %345 = vmatmul.mubr.bf16.gmra.mrb[0].mxu0 %v269
    %v346 = vpop.f32.mrb[0].mxu0
    %v347 = vadd.f32 0.0, %v346
    %v348 = vpop.f32.mrb[0].mxu0
    %v349 = vpop.f32.mrb[0].mxu0
    %v350 = vadd.f32 0.0, %v349
    %v351 = vpop.f32.mrb[0].mxu0
    %352 = vmatprep.mubr.bf16.mxu0 0
    %353 = vmatmul.mubr.bf16.gmra.mrb[0].mxu0 %v272
    %v354 = vpop.f32.mrb[0].mxu0
    %v355 = vadd.f32 0.0, %v354
    %v356 = vpop.f32.mrb[0].mxu0
    %v357 = vpop.f32.mrb[0].mxu0
    %v358 = vadd.f32 0.0, %v357
    %v359 = vpop.f32.mrb[0].mxu0
    %360 = vmatprep.mubr.bf16.mxu0 0
    %361 = vmatmul.mubr.bf16.gmra.mrb[0].mxu0 %v275
    %v362 = vpop.f32.mrb[0].mxu0
    %v363 = vadd.f32 0.0, %v362
    %v364 = vpop.f32.mrb[0].mxu0
    %v365 = vpop.f32.mrb[0].mxu0
    %v366 = vadd.f32 0.0, %v365
    %v367 = vpop.f32.mrb[0].mxu0
    %368 = vmatprep.mubr.bf16.mxu0 0
    %369 = vmatmul.mubr.bf16.gmra.mrb[0].mxu0 %v278
    %v370 = vpop.f32.mrb[0].mxu0
    %v371 = vadd.f32 0.0, %v370
    %v372 = vpop.f32.mrb[0].mxu0
    %v373 = vpop.f32.mrb[0].mxu0
    %v374 = vadd.f32 0.0, %v373
    %v375 = vpop.f32.mrb[0].mxu0
    %376 = vdwg.mxu0
    %v377 = vpack.c.bf16 %v318, %v315
    %v378 = vpack.c.bf16 %v326, %v323
    %v379 = vpack.c.bf16 %v334, %v331
    %v380 = vpack.c.bf16 %v342, %v339
    %v381 = vpack.c.bf16 %v350, %v347
    %v382 = vpack.c.bf16 %v358, %v355
    %v383 = vpack.c.bf16 %v366, %v363
    %v384 = vpack.c.bf16 %v374, %v371
    %386 = vset.pattern.permute.xlu0 0
    %387 = vperm.xlu0 %386, %v26
    %v388 = vpop.permute.xlu0 %387
    %v391 = vunpack.c.l.s4 839922192
    %v392 = vunpack.c.0.s8 %v391
    %v393 = vlaneseq
    %v394 = vshrl.u32 %v393, 7
    %v395 = vsub.s32 %v392, %v394
    %v396 = vrot.slane %v388, %v395
    %398 = vset.pattern.permute.xlu0 0
    %399 = vperm.xlu0 %398, %v27
    %v400 = vpop.permute.xlu0 %399
    %v403 = vunpack.c.l.s4 839922192
    %v404 = vunpack.c.0.s8 %v403
    %v405 = vlaneseq
    %v406 = vshrl.u32 %v405, 7
    %v407 = vsub.s32 %v404, %v406
    %v408 = vrot.slane %v400, %v407
    %410 = vset.pattern.permute.xlu0 0
    %411 = vperm.xlu0 %410, %v28
    %v412 = vpop.permute.xlu0 %411
    %v415 = vunpack.c.l.s4 839922192
    %v416 = vunpack.c.0.s8 %v415
    %v417 = vlaneseq
    %v418 = vshrl.u32 %v417, 7
    %v419 = vsub.s32 %v416, %v418
    %v420 = vrot.slane %v412, %v419
    %422 = vset.pattern.permute.xlu0 0
    %423 = vperm.xlu0 %422, %v29
    %v424 = vpop.permute.xlu0 %423
    %v427 = vunpack.c.l.s4 839922192
    %v428 = vunpack.c.0.s8 %v427
    %v429 = vlaneseq
    %v430 = vshrl.u32 %v429, 7
    %v431 = vsub.s32 %v428, %v430
    %v432 = vrot.slane %v424, %v431
    %434 = vset.pattern.permute.xlu0 0
    %435 = vperm.xlu0 %434, %v30
    %v436 = vpop.permute.xlu0 %435
    %v439 = vunpack.c.l.s4 839922192
    %v440 = vunpack.c.0.s8 %v439
    %v441 = vlaneseq
    %v442 = vshrl.u32 %v441, 7
    %v443 = vsub.s32 %v440, %v442
    %v444 = vrot.slane %v436, %v443
    %446 = vset.pattern.permute.xlu0 0
    %447 = vperm.xlu0 %446, %v31
    %v448 = vpop.permute.xlu0 %447
    %v451 = vunpack.c.l.s4 839922192
    %v452 = vunpack.c.0.s8 %v451
    %v453 = vlaneseq
    %v454 = vshrl.u32 %v453, 7
    %v455 = vsub.s32 %v452, %v454
    %v456 = vrot.slane %v448, %v455
    %458 = vset.pattern.permute.xlu0 0
    %459 = vperm.xlu0 %458, %v32
    %v460 = vpop.permute.xlu0 %459
    %v463 = vunpack.c.l.s4 839922192
    %v464 = vunpack.c.0.s8 %v463
    %v465 = vlaneseq
    %v466 = vshrl.u32 %v465, 7
    %v467 = vsub.s32 %v464, %v466
    %v468 = vrot.slane %v460, %v467
    %470 = vset.pattern.permute.xlu0 0
    %471 = vperm.xlu0 %470, %v33
    %v472 = vpop.permute.xlu0 %471
    %v475 = vunpack.c.l.s4 839922192
    %v476 = vunpack.c.0.s8 %v475
    %v477 = vlaneseq
    %v478 = vshrl.u32 %v477, 7
    %v479 = vsub.s32 %v476, %v478
    %v480 = vrot.slane %v472, %v479
    %482 = vset.pattern.permute.xlu0 0
    %483 = vperm.xlu0 %482, %v34
    %v484 = vpop.permute.xlu0 %483
    %v487 = vunpack.c.l.s4 839922192
    %v488 = vunpack.c.0.s8 %v487
    %v489 = vlaneseq
    %v490 = vshrl.u32 %v489, 7
    %v491 = vsub.s32 %v488, %v490
    %v492 = vrot.slane %v484, %v491
    %494 = vset.pattern.permute.xlu0 0
    %495 = vperm.xlu0 %494, %v35
    %v496 = vpop.permute.xlu0 %495
    %v499 = vunpack.c.l.s4 839922192
    %v500 = vunpack.c.0.s8 %v499
    %v501 = vlaneseq
    %v502 = vshrl.u32 %v501, 7
    %v503 = vsub.s32 %v500, %v502
    %v504 = vrot.slane %v496, %v503
    %506 = vset.pattern.permute.xlu0 0
    %507 = vperm.xlu0 %506, %v36
    %v508 = vpop.permute.xlu0 %507
    %v511 = vunpack.c.l.s4 839922192
    %v512 = vunpack.c.0.s8 %v511
    %v513 = vlaneseq
    %v514 = vshrl.u32 %v513, 7
    %v515 = vsub.s32 %v512, %v514
    %v516 = vrot.slane %v508, %v515
    %518 = vset.pattern.permute.xlu0 0
    %519 = vperm.xlu0 %518, %v37
    %v520 = vpop.permute.xlu0 %519
    %v523 = vunpack.c.l.s4 839922192
    %v524 = vunpack.c.0.s8 %v523
    %v525 = vlaneseq
    %v526 = vshrl.u32 %v525, 7
    %v527 = vsub.s32 %v524, %v526
    %v528 = vrot.slane %v520, %v527
    %530 = vset.pattern.permute.xlu0 0
    %531 = vperm.xlu0 %530, %v38
    %v532 = vpop.permute.xlu0 %531
    %v535 = vunpack.c.l.s4 839922192
    %v536 = vunpack.c.0.s8 %v535
    %v537 = vlaneseq
    %v538 = vshrl.u32 %v537, 7
    %v539 = vsub.s32 %v536, %v538
    %v540 = vrot.slane %v532, %v539
    %542 = vset.pattern.permute.xlu0 0
    %543 = vperm.xlu0 %542, %v39
    %v544 = vpop.permute.xlu0 %543
    %v547 = vunpack.c.l.s4 839922192
    %v548 = vunpack.c.0.s8 %v547
    %v549 = vlaneseq
    %v550 = vshrl.u32 %v549, 7
    %v551 = vsub.s32 %v548, %v550
    %v552 = vrot.slane %v544, %v551
    %554 = vset.pattern.permute.xlu0 0
    %555 = vperm.xlu0 %554, %v40
    %v556 = vpop.permute.xlu0 %555
    %v559 = vunpack.c.l.s4 839922192
    %v560 = vunpack.c.0.s8 %v559
    %v561 = vlaneseq
    %v562 = vshrl.u32 %v561, 7
    %v563 = vsub.s32 %v560, %v562
    %v564 = vrot.slane %v556, %v563
    %566 = vset.pattern.permute.xlu0 0
    %567 = vperm.xlu0 %566, %v41
    %v568 = vpop.permute.xlu0 %567
    %v571 = vunpack.c.l.s4 839922192
    %v572 = vunpack.c.0.s8 %v571
    %v573 = vlaneseq
    %v574 = vshrl.u32 %v573, 7
    %v575 = vsub.s32 %v572, %v574
    %v576 = vrot.slane %v568, %v575
    %v593 = vunpack.c.l.b16 %v396
    %v594 = vunpack.c.l.b16 %v408
    %v595 = vunpack.c.l.b16 %v420
    %v596 = vunpack.c.l.b16 %v432
    %v597 = vunpack.c.l.b16 %v444
    %v598 = vunpack.c.l.b16 %v456
    %v599 = vunpack.c.l.b16 %v468
    %v600 = vunpack.c.l.b16 %v480
    %v601 = vunpack.c.l.b16 %v492
    %v602 = vunpack.c.l.b16 %v504
    %v603 = vunpack.c.l.b16 %v516
    %v604 = vunpack.c.l.b16 %v528
    %v605 = vunpack.c.l.b16 %v540
    %v606 = vunpack.c.l.b16 %v552
    %v607 = vunpack.c.l.b16 %v564
    %v608 = vunpack.c.l.b16 %v576
    %v609 = vpack.c.b16 %v594, %v593
    %v610 = vpack.c.b16 %v596, %v595
    %v611 = vpack.c.b16 %v598, %v597
    %v612 = vpack.c.b16 %v600, %v599
    %v613 = vpack.c.b16 %v602, %v601
    %v614 = vpack.c.b16 %v604, %v603
    %v615 = vpack.c.b16 %v606, %v605
    %v616 = vpack.c.b16 %v608, %v607
    %v625 = vadd.bf16 %v377, %v609
    %v626 = vadd.bf16 %v378, %v610
    %v627 = vadd.bf16 %v379, %v611
    %v628 = vadd.bf16 %v380, %v612
    %v629 = vadd.bf16 %v381, %v613
    %v630 = vadd.bf16 %v382, %v614
    %v631 = vadd.bf16 %v383, %v615
    %v632 = vadd.bf16 %v384, %v616
    %v633 = vmul.bf16 %v625, 1036860877
    %v634 = vmul.bf16 %v626, 1036860877
    %v635 = vmul.bf16 %v627, 1036860877
    %v636 = vmul.bf16 %v628, 1036860877
    %v637 = vmul.bf16 %v629, 1036860877
    %v638 = vmul.bf16 %v630, 1036860877
    %v639 = vmul.bf16 %v631, 1036860877
    %v640 = vmul.bf16 %v632, 1036860877
    %v641 = vmax.bf16 %v625, %v633
    %v642 = vmax.bf16 %v626, %v634
    %v643 = vmax.bf16 %v627, %v635
    %v644 = vmax.bf16 %v628, %v636
    %v645 = vmax.bf16 %v629, %v637
    %v646 = vmax.bf16 %v630, %v638
    %v647 = vmax.bf16 %v631, %v639
    %v648 = vmax.bf16 %v632, %v640
    %v649 = vld [vmem:[%s3] sm:$0xf]
    %v650 = vld [vmem:[%s3 + $0x4] sm:$0xf]
    %v651 = vld [vmem:[%s3 + $0x8] sm:$0xf]
    %v652 = vld [vmem:[%s3 + $0xc] sm:$0xf]
    %v653 = vld [vmem:[%s3 + $0x10] sm:$0xf]
    %v654 = vld [vmem:[%s3 + $0x14] sm:$0xf]
    %v655 = vld [vmem:[%s3 + $0x18] sm:$0xf]
    %v656 = vld [vmem:[%s3 + $0x1c] sm:$0xf]
    %v657 = vld [vmem:[%s3 + $0x20] sm:$0xf]
    %v658 = vld [vmem:[%s3 + $0x24] sm:$0xf]
    %v659 = vld [vmem:[%s3 + $0x28] sm:$0xf]
    %v660 = vld [vmem:[%s3 + $0x2c] sm:$0xf]
    %v661 = vld [vmem:[%s3 + $0x30] sm:$0xf]
    %v662 = vld [vmem:[%s3 + $0x34] sm:$0xf]
    %v663 = vld [vmem:[%s3 + $0x38] sm:$0xf]
    %v664 = vld [vmem:[%s3 + $0x3c] sm:$0xf]
    %v665 = vld [vmem:[%s3 + $0x40] sm:$0xf]
    %v666 = vld [vmem:[%s3 + $0x44] sm:$0xf]
    %v667 = vld [vmem:[%s3 + $0x48] sm:$0xf]
    %v668 = vld [vmem:[%s3 + $0x4c] sm:$0xf]
    %v669 = vld [vmem:[%s3 + $0x50] sm:$0xf]
    %v670 = vld [vmem:[%s3 + $0x54] sm:$0xf]
    %v671 = vld [vmem:[%s3 + $0x58] sm:$0xf]
    %v672 = vld [vmem:[%s3 + $0x5c] sm:$0xf]
    %v673 = vld [vmem:[%s3 + $0x60] sm:$0xf]
    %v674 = vld [vmem:[%s3 + $0x64] sm:$0xf]
    %v675 = vld [vmem:[%s3 + $0x68] sm:$0xf]
    %v676 = vld [vmem:[%s3 + $0x6c] sm:$0xf]
    %v677 = vld [vmem:[%s3 + $0x70] sm:$0xf]
    %v678 = vld [vmem:[%s3 + $0x74] sm:$0xf]
    %v679 = vld [vmem:[%s3 + $0x78] sm:$0xf]
    %v680 = vld [vmem:[%s3 + $0x7c] sm:$0xf]
    %v713 = vunpack.c.l.b16 %v649
    %v714 = vunpack.c.l.b16 %v650
    %v715 = vunpack.c.l.b16 %v651
    %v716 = vunpack.c.l.b16 %v652
    %v717 = vunpack.c.l.b16 %v653
    %v718 = vunpack.c.l.b16 %v654
    %v719 = vunpack.c.l.b16 %v655
    %v720 = vunpack.c.l.b16 %v656
    %v721 = vunpack.c.l.b16 %v657
    %v722 = vunpack.c.l.b16 %v658
    %v723 = vunpack.c.l.b16 %v659
    %v724 = vunpack.c.l.b16 %v660
    %v725 = vunpack.c.l.b16 %v661
    %v726 = vunpack.c.l.b16 %v662
    %v727 = vunpack.c.l.b16 %v663
    %v728 = vunpack.c.l.b16 %v664
    %v729 = vunpack.c.l.b16 %v665
    %v730 = vunpack.c.l.b16 %v666
    %v731 = vunpack.c.l.b16 %v667
    %v732 = vunpack.c.l.b16 %v668
    %v733 = vunpack.c.l.b16 %v669
    %v734 = vunpack.c.l.b16 %v670
    %v735 = vunpack.c.l.b16 %v671
    %v736 = vunpack.c.l.b16 %v672
    %v737 = vunpack.c.l.b16 %v673
    %v738 = vunpack.c.l.b16 %v674
    %v739 = vunpack.c.l.b16 %v675
    %v740 = vunpack.c.l.b16 %v676
    %v741 = vunpack.c.l.b16 %v677
    %v742 = vunpack.c.l.b16 %v678
    %v743 = vunpack.c.l.b16 %v679
    %v744 = vunpack.c.l.b16 %v680
    %v745 = vpack.c.b16 %v714, %v713
    %v746 = vpack.c.b16 %v716, %v715
    %v747 = vpack.c.b16 %v718, %v717
    %v748 = vpack.c.b16 %v720, %v719
    %v749 = vpack.c.b16 %v722, %v721
    %v750 = vpack.c.b16 %v724, %v723
    %v751 = vpack.c.b16 %v726, %v725
    %v752 = vpack.c.b16 %v728, %v727
    %v753 = vpack.c.b16 %v730, %v729
    %v754 = vpack.c.b16 %v732, %v731
    %v755 = vpack.c.b16 %v734, %v733
    %v756 = vpack.c.b16 %v736, %v735
    %v757 = vpack.c.b16 %v738, %v737
    %v758 = vpack.c.b16 %v740, %v739
    %v759 = vpack.c.b16 %v742, %v741
    %v760 = vpack.c.b16 %v744, %v743
    %777 = vmatprep.subr.bf16.mxu0 0
    %778 = vmatpush1.bf16.msra.mxu0 %v641
    %779 = vmatprep.subr.bf16.mxu0 0
    %780 = vmatpush1.bf16.msra.mxu0 %v642
    %781 = vmatprep.subr.bf16.mxu0 0
    %782 = vmatpush1.bf16.msra.mxu0 %v643
    %783 = vmatprep.subr.bf16.mxu0 0
    %784 = vmatpush1.bf16.msra.mxu0 %v644
    %785 = vmatprep.subr.bf16.mxu0 0
    %786 = vmatpush1.bf16.msra.mxu0 %v645
    %787 = vmatprep.subr.bf16.mxu0 0
    %788 = vmatpush1.bf16.msra.mxu0 %v646
    %789 = vmatprep.subr.bf16.mxu0 0
    %790 = vmatpush1.bf16.msra.mxu0 %v647
    %791 = vmatprep.subr.bf16.mxu0 0
    %792 = vmatpush1.bf16.msra.mxu0 %v648
    %793 = vmatprep.subr.bf16.mxu0 0
    %794 = vmatpush1.bf16.msra.mxu0 0
    %795 = vmatprep.subr.bf16.mxu0 0
    %796 = vmatpush1.bf16.msra.mxu0 0
    %797 = vmatprep.subr.bf16.mxu0 0
    %798 = vmatpush1.bf16.msra.mxu0 0
    %799 = vmatprep.subr.bf16.mxu0 0
    %800 = vmatpush1.bf16.msra.mxu0 0
    %801 = vmatprep.subr.bf16.mxu0 0
    %802 = vmatpush1.bf16.msra.mxu0 0
    %803 = vmatprep.subr.bf16.mxu0 0
    %804 = vmatpush1.bf16.msra.mxu0 0
    %805 = vmatprep.subr.bf16.mxu0 0
    %806 = vmatpush1.bf16.msra.mxu0 0
    %807 = vmatprep.subr.bf16.mxu0 0
    %808 = vmatpush1.bf16.msra.mxu0 0
    %809 = vmatprep.mubr.bf16.mxu0 0
    %810 = vmatmul.mubr.bf16.gmra.mrb[0].mxu0 %v745
    %v811 = vpop.f32.mrb[0].mxu0
    %v812 = vadd.f32 0.0, %v811
    %v813 = vpop.f32.mrb[0].mxu0
    %v814 = vpop.f32.mrb[0].mxu0
    %v815 = vadd.f32 0.0, %v814
    %v816 = vpop.f32.mrb[0].mxu0
    %817 = vmatprep.mubr.bf16.mxu0 0
    %818 = vmatmul.mubr.bf16.gmra.mrb[0].mxu0 %v746
    %v819 = vpop.f32.mrb[0].mxu0
    %v820 = vadd.f32 0.0, %v819
    %v821 = vpop.f32.mrb[0].mxu0
    %v822 = vpop.f32.mrb[0].mxu0
    %v823 = vadd.f32 0.0, %v822
    %v824 = vpop.f32.mrb[0].mxu0
    %825 = vmatprep.mubr.bf16.mxu0 0
    %826 = vmatmul.mubr.bf16.gmra.mrb[0].mxu0 %v747
    %v827 = vpop.f32.mrb[0].mxu0
    %v828 = vadd.f32 0.0, %v827
    %v829 = vpop.f32.mrb[0].mxu0
    %v830 = vpop.f32.mrb[0].mxu0
    %v831 = vadd.f32 0.0, %v830
    %v832 = vpop.f32.mrb[0].mxu0
    %833 = vmatprep.mubr.bf16.mxu0 0
    %834 = vmatmul.mubr.bf16.gmra.mrb[0].mxu0 %v748
    %v835 = vpop.f32.mrb[0].mxu0
    %v836 = vadd.f32 0.0, %v835
    %v837 = vpop.f32.mrb[0].mxu0
    %v838 = vpop.f32.mrb[0].mxu0
    %v839 = vadd.f32 0.0, %v838
    %v840 = vpop.f32.mrb[0].mxu0
    %841 = vmatprep.mubr.bf16.mxu0 0
    %842 = vmatmul.mubr.bf16.gmra.mrb[0].mxu0 %v749
    %v843 = vpop.f32.mrb[0].mxu0
    %v844 = vadd.f32 0.0, %v843
    %v845 = vpop.f32.mrb[0].mxu0
    %v846 = vpop.f32.mrb[0].mxu0
    %v847 = vadd.f32 0.0, %v846
    %v848 = vpop.f32.mrb[0].mxu0
    %849 = vmatprep.mubr.bf16.mxu0 0
    %850 = vmatmul.mubr.bf16.gmra.mrb[0].mxu0 %v750
    %v851 = vpop.f32.mrb[0].mxu0
    %v852 = vadd.f32 0.0, %v851
    %v853 = vpop.f32.mrb[0].mxu0
    %v854 = vpop.f32.mrb[0].mxu0
    %v855 = vadd.f32 0.0, %v854
    %v856 = vpop.f32.mrb[0].mxu0
    %857 = vmatprep.mubr.bf16.mxu0 0
    %858 = vmatmul.mubr.bf16.gmra.mrb[0].mxu0 %v751
    %v859 = vpop.f32.mrb[0].mxu0
    %v860 = vadd.f32 0.0, %v859
    %v861 = vpop.f32.mrb[0].mxu0
    %v862 = vpop.f32.mrb[0].mxu0
    %v863 = vadd.f32 0.0, %v862
    %v864 = vpop.f32.mrb[0].mxu0
    %865 = vmatprep.mubr.bf16.mxu0 0
    %866 = vmatmul.mubr.bf16.gmra.mrb[0].mxu0 %v752
    %v867 = vpop.f32.mrb[0].mxu0
    %v868 = vadd.f32 0.0, %v867
    %v869 = vpop.f32.mrb[0].mxu0
    %v870 = vpop.f32.mrb[0].mxu0
    %v871 = vadd.f32 0.0, %v870
    %v872 = vpop.f32.mrb[0].mxu0
    %873 = vmatprep.mubr.bf16.mxu0 0
    %874 = vmatmul.mubr.bf16.gmra.mrb[0].mxu0 %v753
    %v875 = vpop.f32.mrb[0].mxu0
    %v876 = vadd.f32 0.0, %v875
    %v877 = vpop.f32.mrb[0].mxu0
    %v878 = vpop.f32.mrb[0].mxu0
    %v879 = vadd.f32 0.0, %v878
    %v880 = vpop.f32.mrb[0].mxu0
    %881 = vmatprep.mubr.bf16.mxu0 0
    %882 = vmatmul.mubr.bf16.gmra.mrb[0].mxu0 %v754
    %v883 = vpop.f32.mrb[0].mxu0
    %v884 = vadd.f32 0.0, %v883
    %v885 = vpop.f32.mrb[0].mxu0
    %v886 = vpop.f32.mrb[0].mxu0
    %v887 = vadd.f32 0.0, %v886
    %v888 = vpop.f32.mrb[0].mxu0
    %889 = vmatprep.mubr.bf16.mxu0 0
    %890 = vmatmul.mubr.bf16.gmra.mrb[0].mxu0 %v755
    %v891 = vpop.f32.mrb[0].mxu0
    %v892 = vadd.f32 0.0, %v891
    %v893 = vpop.f32.mrb[0].mxu0
    %v894 = vpop.f32.mrb[0].mxu0
    %v895 = vadd.f32 0.0, %v894
    %v896 = vpop.f32.mrb[0].mxu0
    %897 = vmatprep.mubr.bf16.mxu0 0
    %898 = vmatmul.mubr.bf16.gmra.mrb[0].mxu0 %v756
    %v899 = vpop.f32.mrb[0].mxu0
    %v900 = vadd.f32 0.0, %v899
    %v901 = vpop.f32.mrb[0].mxu0
    %v902 = vpop.f32.mrb[0].mxu0
    %v903 = vadd.f32 0.0, %v902
    %v904 = vpop.f32.mrb[0].mxu0
    %905 = vmatprep.mubr.bf16.mxu0 0
    %906 = vmatmul.mubr.bf16.gmra.mrb[0].mxu0 %v757
    %v907 = vpop.f32.mrb[0].mxu0
    %v908 = vadd.f32 0.0, %v907
    %v909 = vpop.f32.mrb[0].mxu0
    %v910 = vpop.f32.mrb[0].mxu0
    %v911 = vadd.f32 0.0, %v910
    %v912 = vpop.f32.mrb[0].mxu0
    %913 = vmatprep.mubr.bf16.mxu0 0
    %914 = vmatmul.mubr.bf16.gmra.mrb[0].mxu0 %v758
    %v915 = vpop.f32.mrb[0].mxu0
    %v916 = vadd.f32 0.0, %v915
    %v917 = vpop.f32.mrb[0].mxu0
    %v918 = vpop.f32.mrb[0].mxu0
    %v919 = vadd.f32 0.0, %v918
    %v920 = vpop.f32.mrb[0].mxu0
    %921 = vmatprep.mubr.bf16.mxu0 0
    %922 = vmatmul.mubr.bf16.gmra.mrb[0].mxu0 %v759
    %v923 = vpop.f32.mrb[0].mxu0
    %v924 = vadd.f32 0.0, %v923
    %v925 = vpop.f32.mrb[0].mxu0
    %v926 = vpop.f32.mrb[0].mxu0
    %v927 = vadd.f32 0.0, %v926
    %v928 = vpop.f32.mrb[0].mxu0
    %929 = vmatprep.mubr.bf16.mxu0 0
    %930 = vmatmul.mubr.bf16.gmra.mrb[0].mxu0 %v760
    %v931 = vpop.f32.mrb[0].mxu0
    %v932 = vadd.f32 0.0, %v931
    %v933 = vpop.f32.mrb[0].mxu0
    %v934 = vpop.f32.mrb[0].mxu0
    %v935 = vadd.f32 0.0, %v934
    %v936 = vpop.f32.mrb[0].mxu0
    %937 = vdwg.mxu0
    %v938 = vpack.c.bf16 %v815, %v812
    %v939 = vpack.c.bf16 %v823, %v820
    %v940 = vpack.c.bf16 %v831, %v828
    %v941 = vpack.c.bf16 %v839, %v836
    %v942 = vpack.c.bf16 %v847, %v844
    %v943 = vpack.c.bf16 %v855, %v852
    %v944 = vpack.c.bf16 %v863, %v860
    %v945 = vpack.c.bf16 %v871, %v868
    %v946 = vpack.c.bf16 %v879, %v876
    %v947 = vpack.c.bf16 %v887, %v884
    %v948 = vpack.c.bf16 %v895, %v892
    %v949 = vpack.c.bf16 %v903, %v900
    %v950 = vpack.c.bf16 %v911, %v908
    %v951 = vpack.c.bf16 %v919, %v916
    %v952 = vpack.c.bf16 %v927, %v924
    %v953 = vpack.c.bf16 %v935, %v932
    %955 = vset.pattern.permute.xlu0 0
    %956 = vperm.xlu0 %955, %v42
    %v957 = vpop.permute.xlu0 %956
    %v960 = vunpack.c.l.s4 839922192
    %v961 = vunpack.c.0.s8 %v960
    %v962 = vlaneseq
    %v963 = vshrl.u32 %v962, 7
    %v964 = vsub.s32 %v961, %v963
    %v965 = vrot.slane %v957, %v964
    %967 = vset.pattern.permute.xlu0 0
    %968 = vperm.xlu0 %967, %v43
    %v969 = vpop.permute.xlu0 %968
    %v972 = vunpack.c.l.s4 839922192
    %v973 = vunpack.c.0.s8 %v972
    %v974 = vlaneseq
    %v975 = vshrl.u32 %v974, 7
    %v976 = vsub.s32 %v973, %v975
    %v977 = vrot.slane %v969, %v976
    %979 = vset.pattern.permute.xlu0 0
    %980 = vperm.xlu0 %979, %v44
    %v981 = vpop.permute.xlu0 %980
    %v984 = vunpack.c.l.s4 839922192
    %v985 = vunpack.c.0.s8 %v984
    %v986 = vlaneseq
    %v987 = vshrl.u32 %v986, 7
    %v988 = vsub.s32 %v985, %v987
    %v989 = vrot.slane %v981, %v988
    %991 = vset.pattern.permute.xlu0 0
    %992 = vperm.xlu0 %991, %v45
    %v993 = vpop.permute.xlu0 %992
    %v996 = vunpack.c.l.s4 839922192
    %v997 = vunpack.c.0.s8 %v996
    %v998 = vlaneseq
    %v999 = vshrl.u32 %v998, 7
    %v1000 = vsub.s32 %v997, %v999
    %v1001 = vrot.slane %v993, %v1000
    %1003 = vset.pattern.permute.xlu0 0
    %1004 = vperm.xlu0 %1003, %v46
    %v1005 = vpop.permute.xlu0 %1004
    %v1008 = vunpack.c.l.s4 839922192
    %v1009 = vunpack.c.0.s8 %v1008
    %v1010 = vlaneseq
    %v1011 = vshrl.u32 %v1010, 7
    %v1012 = vsub.s32 %v1009, %v1011
    %v1013 = vrot.slane %v1005, %v1012
    %1015 = vset.pattern.permute.xlu0 0
    %1016 = vperm.xlu0 %1015, %v47
    %v1017 = vpop.permute.xlu0 %1016
    %v1020 = vunpack.c.l.s4 839922192
    %v1021 = vunpack.c.0.s8 %v1020
    %v1022 = vlaneseq
    %v1023 = vshrl.u32 %v1022, 7
    %v1024 = vsub.s32 %v1021, %v1023
    %v1025 = vrot.slane %v1017, %v1024
    %1027 = vset.pattern.permute.xlu0 0
    %1028 = vperm.xlu0 %1027, %v48
    %v1029 = vpop.permute.xlu0 %1028
    %v1032 = vunpack.c.l.s4 839922192
    %v1033 = vunpack.c.0.s8 %v1032
    %v1034 = vlaneseq
    %v1035 = vshrl.u32 %v1034, 7
    %v1036 = vsub.s32 %v1033, %v1035
    %v1037 = vrot.slane %v1029, %v1036
    %1039 = vset.pattern.permute.xlu0 0
    %1040 = vperm.xlu0 %1039, %v49
    %v1041 = vpop.permute.xlu0 %1040
    %v1044 = vunpack.c.l.s4 839922192
    %v1045 = vunpack.c.0.s8 %v1044
    %v1046 = vlaneseq
    %v1047 = vshrl.u32 %v1046, 7
    %v1048 = vsub.s32 %v1045, %v1047
    %v1049 = vrot.slane %v1041, %v1048
    %1051 = vset.pattern.permute.xlu0 0
    %1052 = vperm.xlu0 %1051, %v50
    %v1053 = vpop.permute.xlu0 %1052
    %v1056 = vunpack.c.l.s4 839922192
    %v1057 = vunpack.c.0.s8 %v1056
    %v1058 = vlaneseq
    %v1059 = vshrl.u32 %v1058, 7
    %v1060 = vsub.s32 %v1057, %v1059
    %v1061 = vrot.slane %v1053, %v1060
    %1063 = vset.pattern.permute.xlu0 0
    %1064 = vperm.xlu0 %1063, %v51
    %v1065 = vpop.permute.xlu0 %1064
    %v1068 = vunpack.c.l.s4 839922192
    %v1069 = vunpack.c.0.s8 %v1068
    %v1070 = vlaneseq
    %v1071 = vshrl.u32 %v1070, 7
    %v1072 = vsub.s32 %v1069, %v1071
    %v1073 = vrot.slane %v1065, %v1072
    %1075 = vset.pattern.permute.xlu0 0
    %1076 = vperm.xlu0 %1075, %v52
    %v1077 = vpop.permute.xlu0 %1076
    %v1080 = vunpack.c.l.s4 839922192
    %v1081 = vunpack.c.0.s8 %v1080
    %v1082 = vlaneseq
    %v1083 = vshrl.u32 %v1082, 7
    %v1084 = vsub.s32 %v1081, %v1083
    %v1085 = vrot.slane %v1077, %v1084
    %1087 = vset.pattern.permute.xlu0 0
    %1088 = vperm.xlu0 %1087, %v53
    %v1089 = vpop.permute.xlu0 %1088
    %v1092 = vunpack.c.l.s4 839922192
    %v1093 = vunpack.c.0.s8 %v1092
    %v1094 = vlaneseq
    %v1095 = vshrl.u32 %v1094, 7
    %v1096 = vsub.s32 %v1093, %v1095
    %v1097 = vrot.slane %v1089, %v1096
    %1099 = vset.pattern.permute.xlu0 0
    %1100 = vperm.xlu0 %1099, %v54
    %v1101 = vpop.permute.xlu0 %1100
    %v1104 = vunpack.c.l.s4 839922192
    %v1105 = vunpack.c.0.s8 %v1104
    %v1106 = vlaneseq
    %v1107 = vshrl.u32 %v1106, 7
    %v1108 = vsub.s32 %v1105, %v1107
    %v1109 = vrot.slane %v1101, %v1108
    %1111 = vset.pattern.permute.xlu0 0
    %1112 = vperm.xlu0 %1111, %v55
    %v1113 = vpop.permute.xlu0 %1112
    %v1116 = vunpack.c.l.s4 839922192
    %v1117 = vunpack.c.0.s8 %v1116
    %v1118 = vlaneseq
    %v1119 = vshrl.u32 %v1118, 7
    %v1120 = vsub.s32 %v1117, %v1119
    %v1121 = vrot.slane %v1113, %v1120
    %1123 = vset.pattern.permute.xlu0 0
    %1124 = vperm.xlu0 %1123, %v56
    %v1125 = vpop.permute.xlu0 %1124
    %v1128 = vunpack.c.l.s4 839922192
    %v1129 = vunpack.c.0.s8 %v1128
    %v1130 = vlaneseq
    %v1131 = vshrl.u32 %v1130, 7
    %v1132 = vsub.s32 %v1129, %v1131
    %v1133 = vrot.slane %v1125, %v1132
    %1135 = vset.pattern.permute.xlu0 0
    %1136 = vperm.xlu0 %1135, %v57
    %v1137 = vpop.permute.xlu0 %1136
    %v1140 = vunpack.c.l.s4 839922192
    %v1141 = vunpack.c.0.s8 %v1140
    %v1142 = vlaneseq
    %v1143 = vshrl.u32 %v1142, 7
    %v1144 = vsub.s32 %v1141, %v1143
    %v1145 = vrot.slane %v1137, %v1144
    %1147 = vset.pattern.permute.xlu0 0
    %1148 = vperm.xlu0 %1147, %v58
    %v1149 = vpop.permute.xlu0 %1148
    %v1152 = vunpack.c.l.s4 839922192
    %v1153 = vunpack.c.0.s8 %v1152
    %v1154 = vlaneseq
    %v1155 = vshrl.u32 %v1154, 7
    %v1156 = vsub.s32 %v1153, %v1155
    %v1157 = vrot.slane %v1149, %v1156
    %1159 = vset.pattern.permute.xlu0 0
    %1160 = vperm.xlu0 %1159, %v59
    %v1161 = vpop.permute.xlu0 %1160
    %v1164 = vunpack.c.l.s4 839922192
    %v1165 = vunpack.c.0.s8 %v1164
    %v1166 = vlaneseq
    %v1167 = vshrl.u32 %v1166, 7
    %v1168 = vsub.s32 %v1165, %v1167
    %v1169 = vrot.slane %v1161, %v1168
    %1171 = vset.pattern.permute.xlu0 0
    %1172 = vperm.xlu0 %1171, %v60
    %v1173 = vpop.permute.xlu0 %1172
    %v1176 = vunpack.c.l.s4 839922192
    %v1177 = vunpack.c.0.s8 %v1176
    %v1178 = vlaneseq
    %v1179 = vshrl.u32 %v1178, 7
    %v1180 = vsub.s32 %v1177, %v1179
    %v1181 = vrot.slane %v1173, %v1180
    %1183 = vset.pattern.permute.xlu0 0
    %1184 = vperm.xlu0 %1183, %v61
    %v1185 = vpop.permute.xlu0 %1184
    %v1188 = vunpack.c.l.s4 839922192
    %v1189 = vunpack.c.0.s8 %v1188
    %v1190 = vlaneseq
    %v1191 = vshrl.u32 %v1190, 7
    %v1192 = vsub.s32 %v1189, %v1191
    %v1193 = vrot.slane %v1185, %v1192
    %1195 = vset.pattern.permute.xlu0 0
    %1196 = vperm.xlu0 %1195, %v62
    %v1197 = vpop.permute.xlu0 %1196
    %v1200 = vunpack.c.l.s4 839922192
    %v1201 = vunpack.c.0.s8 %v1200
    %v1202 = vlaneseq
    %v1203 = vshrl.u32 %v1202, 7
    %v1204 = vsub.s32 %v1201, %v1203
    %v1205 = vrot.slane %v1197, %v1204
    %1207 = vset.pattern.permute.xlu0 0
    %1208 = vperm.xlu0 %1207, %v63
    %v1209 = vpop.permute.xlu0 %1208
    %v1212 = vunpack.c.l.s4 839922192
    %v1213 = vunpack.c.0.s8 %v1212
    %v1214 = vlaneseq
    %v1215 = vshrl.u32 %v1214, 7
    %v1216 = vsub.s32 %v1213, %v1215
    %v1217 = vrot.slane %v1209, %v1216
    %1219 = vset.pattern.permute.xlu0 0
    %1220 = vperm.xlu0 %1219, %v64
    %v1221 = vpop.permute.xlu0 %1220
    %v1224 = vunpack.c.l.s4 839922192
    %v1225 = vunpack.c.0.s8 %v1224
    %v1226 = vlaneseq
    %v1227 = vshrl.u32 %v1226, 7
    %v1228 = vsub.s32 %v1225, %v1227
    %v1229 = vrot.slane %v1221, %v1228
    %1231 = vset.pattern.permute.xlu0 0
    %1232 = vperm.xlu0 %1231, %v65
    %v1233 = vpop.permute.xlu0 %1232
    %v1236 = vunpack.c.l.s4 839922192
    %v1237 = vunpack.c.0.s8 %v1236
    %v1238 = vlaneseq
    %v1239 = vshrl.u32 %v1238, 7
    %v1240 = vsub.s32 %v1237, %v1239
    %v1241 = vrot.slane %v1233, %v1240
    %1243 = vset.pattern.permute.xlu0 0
    %1244 = vperm.xlu0 %1243, %v66
    %v1245 = vpop.permute.xlu0 %1244
    %v1248 = vunpack.c.l.s4 839922192
    %v1249 = vunpack.c.0.s8 %v1248
    %v1250 = vlaneseq
    %v1251 = vshrl.u32 %v1250, 7
    %v1252 = vsub.s32 %v1249, %v1251
    %v1253 = vrot.slane %v1245, %v1252
    %1255 = vset.pattern.permute.xlu0 0
    %1256 = vperm.xlu0 %1255, %v67
    %v1257 = vpop.permute.xlu0 %1256
    %v1260 = vunpack.c.l.s4 839922192
    %v1261 = vunpack.c.0.s8 %v1260
    %v1262 = vlaneseq
    %v1263 = vshrl.u32 %v1262, 7
    %v1264 = vsub.s32 %v1261, %v1263
    %v1265 = vrot.slane %v1257, %v1264
    %1267 = vset.pattern.permute.xlu0 0
    %1268 = vperm.xlu0 %1267, %v68
    %v1269 = vpop.permute.xlu0 %1268
    %v1272 = vunpack.c.l.s4 839922192
    %v1273 = vunpack.c.0.s8 %v1272
    %v1274 = vlaneseq
    %v1275 = vshrl.u32 %v1274, 7
    %v1276 = vsub.s32 %v1273, %v1275
    %v1277 = vrot.slane %v1269, %v1276
    %1279 = vset.pattern.permute.xlu0 0
    %1280 = vperm.xlu0 %1279, %v69
    %v1281 = vpop.permute.xlu0 %1280
    %v1284 = vunpack.c.l.s4 839922192
    %v1285 = vunpack.c.0.s8 %v1284
    %v1286 = vlaneseq
    %v1287 = vshrl.u32 %v1286, 7
    %v1288 = vsub.s32 %v1285, %v1287
    %v1289 = vrot.slane %v1281, %v1288
    %1291 = vset.pattern.permute.xlu0 0
    %1292 = vperm.xlu0 %1291, %v70
    %v1293 = vpop.permute.xlu0 %1292
    %v1296 = vunpack.c.l.s4 839922192
    %v1297 = vunpack.c.0.s8 %v1296
    %v1298 = vlaneseq
    %v1299 = vshrl.u32 %v1298, 7
    %v1300 = vsub.s32 %v1297, %v1299
    %v1301 = vrot.slane %v1293, %v1300
    %1303 = vset.pattern.permute.xlu0 0
    %1304 = vperm.xlu0 %1303, %v71
    %v1305 = vpop.permute.xlu0 %1304
    %v1308 = vunpack.c.l.s4 839922192
    %v1309 = vunpack.c.0.s8 %v1308
    %v1310 = vlaneseq
    %v1311 = vshrl.u32 %v1310, 7
    %v1312 = vsub.s32 %v1309, %v1311
    %v1313 = vrot.slane %v1305, %v1312
    %1315 = vset.pattern.permute.xlu0 0
    %1316 = vperm.xlu0 %1315, %v72
    %v1317 = vpop.permute.xlu0 %1316
    %v1320 = vunpack.c.l.s4 839922192
    %v1321 = vunpack.c.0.s8 %v1320
    %v1322 = vlaneseq
    %v1323 = vshrl.u32 %v1322, 7
    %v1324 = vsub.s32 %v1321, %v1323
    %v1325 = vrot.slane %v1317, %v1324
    %1327 = vset.pattern.permute.xlu0 0
    %1328 = vperm.xlu0 %1327, %v73
    %v1329 = vpop.permute.xlu0 %1328
    %v1332 = vunpack.c.l.s4 839922192
    %v1333 = vunpack.c.0.s8 %v1332
    %v1334 = vlaneseq
    %v1335 = vshrl.u32 %v1334, 7
    %v1336 = vsub.s32 %v1333, %v1335
    %v1337 = vrot.slane %v1329, %v1336
    %v1370 = vunpack.c.l.b16 %v965
    %v1371 = vunpack.c.l.b16 %v977
    %v1372 = vunpack.c.l.b16 %v989
    %v1373 = vunpack.c.l.b16 %v1001
    %v1374 = vunpack.c.l.b16 %v1013
    %v1375 = vunpack.c.l.b16 %v1025
    %v1376 = vunpack.c.l.b16 %v1037
    %v1377 = vunpack.c.l.b16 %v1049
    %v1378 = vunpack.c.l.b16 %v1061
    %v1379 = vunpack.c.l.b16 %v1073
    %v1380 = vunpack.c.l.b16 %v1085
    %v1381 = vunpack.c.l.b16 %v1097
    %v1382 = vunpack.c.l.b16 %v1109
    %v1383 = vunpack.c.l.b16 %v1121
    %v1384 = vunpack.c.l.b16 %v1133
    %v1385 = vunpack.c.l.b16 %v1145
    %v1386 = vunpack.c.l.b16 %v1157
    %v1387 = vunpack.c.l.b16 %v1169
    %v1388 = vunpack.c.l.b16 %v1181
    %v1389 = vunpack.c.l.b16 %v1193
    %v1390 = vunpack.c.l.b16 %v1205
    %v1391 = vunpack.c.l.b16 %v1217
    %v1392 = vunpack.c.l.b16 %v1229
    %v1393 = vunpack.c.l.b16 %v1241
    %v1394 = vunpack.c.l.b16 %v1253
    %v1395 = vunpack.c.l.b16 %v1265
    %v1396 = vunpack.c.l.b16 %v1277
    %v1397 = vunpack.c.l.b16 %v1289
    %v1398 = vunpack.c.l.b16 %v1301
    %v1399 = vunpack.c.l.b16 %v1313
    %v1400 = vunpack.c.l.b16 %v1325
    %v1401 = vunpack.c.l.b16 %v1337
    %v1402 = vpack.c.b16 %v1371, %v1370
    %v1403 = vpack.c.b16 %v1373, %v1372
    %v1404 = vpack.c.b16 %v1375, %v1374
    %v1405 = vpack.c.b16 %v1377, %v1376
    %v1406 = vpack.c.b16 %v1379, %v1378
    %v1407 = vpack.c.b16 %v1381, %v1380
    %v1408 = vpack.c.b16 %v1383, %v1382
    %v1409 = vpack.c.b16 %v1385, %v1384
    %v1410 = vpack.c.b16 %v1387, %v1386
    %v1411 = vpack.c.b16 %v1389, %v1388
    %v1412 = vpack.c.b16 %v1391, %v1390
    %v1413 = vpack.c.b16 %v1393, %v1392
    %v1414 = vpack.c.b16 %v1395, %v1394
    %v1415 = vpack.c.b16 %v1397, %v1396
    %v1416 = vpack.c.b16 %v1399, %v1398
    %v1417 = vpack.c.b16 %v1401, %v1400
    %v1434 = vadd.bf16 %v938, %v1402
    %v1435 = vadd.bf16 %v939, %v1403
    %v1436 = vadd.bf16 %v940, %v1404
    %v1437 = vadd.bf16 %v941, %v1405
    %v1438 = vadd.bf16 %v942, %v1406
    %v1439 = vadd.bf16 %v943, %v1407
    %v1440 = vadd.bf16 %v944, %v1408
    %v1441 = vadd.bf16 %v945, %v1409
    %v1442 = vadd.bf16 %v946, %v1410
    %v1443 = vadd.bf16 %v947, %v1411
    %v1444 = vadd.bf16 %v948, %v1412
    %v1445 = vadd.bf16 %v949, %v1413
    %v1446 = vadd.bf16 %v950, %v1414
    %v1447 = vadd.bf16 %v951, %v1415
    %v1448 = vadd.bf16 %v952, %v1416
    %v1449 = vadd.bf16 %v953, %v1417
    %v1450 = vmul.bf16 %v1434, 1036860877
    %v1451 = vmul.bf16 %v1435, 1036860877
    %v1452 = vmul.bf16 %v1436, 1036860877
    %v1453 = vmul.bf16 %v1437, 1036860877
    %v1454 = vmul.bf16 %v1438, 1036860877
    %v1455 = vmul.bf16 %v1439, 1036860877
    %v1456 = vmul.bf16 %v1440, 1036860877
    %v1457 = vmul.bf16 %v1441, 1036860877
    %v1458 = vmul.bf16 %v1442, 1036860877
    %v1459 = vmul.bf16 %v1443, 1036860877
    %v1460 = vmul.bf16 %v1444, 1036860877
    %v1461 = vmul.bf16 %v1445, 1036860877
    %v1462 = vmul.bf16 %v1446, 1036860877
    %v1463 = vmul.bf16 %v1447, 1036860877
    %v1464 = vmul.bf16 %v1448, 1036860877
    %v1465 = vmul.bf16 %v1449, 1036860877
    %v1466 = vmax.bf16 %v1434, %v1450
    %v1467 = vmax.bf16 %v1435, %v1451
    %v1468 = vmax.bf16 %v1436, %v1452
    %v1469 = vmax.bf16 %v1437, %v1453
    %v1470 = vmax.bf16 %v1438, %v1454
    %v1471 = vmax.bf16 %v1439, %v1455
    %v1472 = vmax.bf16 %v1440, %v1456
    %v1473 = vmax.bf16 %v1441, %v1457
    %v1474 = vmax.bf16 %v1442, %v1458
    %v1475 = vmax.bf16 %v1443, %v1459
    %v1476 = vmax.bf16 %v1444, %v1460
    %v1477 = vmax.bf16 %v1445, %v1461
    %v1478 = vmax.bf16 %v1446, %v1462
    %v1479 = vmax.bf16 %v1447, %v1463
    %v1480 = vmax.bf16 %v1448, %v1464
    %v1481 = vmax.bf16 %v1449, %v1465
    %v1482 = vld [vmem:[%s4] sm:$0xff]
    %1484 = vset.pattern.permute.xlu0 0
    %1485 = vperm.xlu0 %1484, %v75
    %v1486 = vpop.permute.xlu0 %1485
    %v1489 = vunpack.c.l.b16 %v1482
    %v1490 = vunpack.c.h.b16 %v1482
    %v1491 = vpack.c.b16 %v1489, %v1489
    %v1492 = vpack.c.b16 %v1490, %v1490
    %1495 = vmatprep.subr.bf16.mxu0 0
    %1496 = vmatpush1.bf16.msra.mxu0 %v1466
    %1497 = vmatprep.subr.bf16.mxu0 0
    %1498 = vmatpush1.bf16.msra.mxu0 %v1467
    %1499 = vmatprep.subr.bf16.mxu0 0
    %1500 = vmatpush1.bf16.msra.mxu0 %v1468
    %1501 = vmatprep.subr.bf16.mxu0 0
    %1502 = vmatpush1.bf16.msra.mxu0 %v1469
    %1503 = vmatprep.subr.bf16.mxu0 0
    %1504 = vmatpush1.bf16.msra.mxu0 %v1470
    %1505 = vmatprep.subr.bf16.mxu0 0
    %1506 = vmatpush1.bf16.msra.mxu0 %v1471
    %1507 = vmatprep.subr.bf16.mxu0 0
    %1508 = vmatpush1.bf16.msra.mxu0 %v1472
    %1509 = vmatprep.subr.bf16.mxu0 0
    %1510 = vmatpush1.bf16.msra.mxu0 %v1473
    %1511 = vmatprep.subr.bf16.mxu0 0
    %1512 = vmatpush1.bf16.msra.mxu0 %v1474
    %1513 = vmatprep.subr.bf16.mxu0 0
    %1514 = vmatpush1.bf16.msra.mxu0 %v1475
    %1515 = vmatprep.subr.bf16.mxu0 0
    %1516 = vmatpush1.bf16.msra.mxu0 %v1476
    %1517 = vmatprep.subr.bf16.mxu0 0
    %1518 = vmatpush1.bf16.msra.mxu0 %v1477
    %1519 = vmatprep.subr.bf16.mxu0 0
    %1520 = vmatpush1.bf16.msra.mxu0 %v1478
    %1521 = vmatprep.subr.bf16.mxu0 0
    %1522 = vmatpush1.bf16.msra.mxu0 %v1479
    %1523 = vmatprep.subr.bf16.mxu0 0
    %1524 = vmatpush1.bf16.msra.mxu0 %v1480
    %1525 = vmatprep.subr.bf16.mxu0 0
    %1526 = vmatpush1.bf16.msra.mxu0 %v1481
    %1527 = vmatprep.mubr.bf16.mxu0 %v1492
    %1528 = vmatmul.mubr.bf16.gmra.mrb[0].mxu0 %v1491
    %v1529 = vpop.f32.mrb[0].mxu0
    %v1530 = vadd.f32 %v1486, %v1529
    %v1531 = vpop.f32.mrb[0].mxu0
    %v1532 = vpop.f32.mrb[0].mxu0
    %v1533 = vpop.f32.mrb[0].mxu0
    %1534 = vdwg.mxu0
    %1535 = vst [vmem:[#allocation2] sm:$0xff] %v1530
    // Predicated region
    $region26: #{tpu_custom_call.1} parent=1 // pred_check
      _
    $region27: #{tpu_custom_call.1} parent=1 // pred_check_branch
      %1537 = sbr.rel (0) target = $region29
    $region28: #{tpu_custom_call.1} parent=1 // pred_region
      %s1539 = ssub.s32 128, 128
      %1540 = vsyncadd [#allocation3], %s1539
      %s1542 = sshll.u32 [#allocation2], 4
      %s1543 = int_to_ptr.vmem [resolvable:$true] %s1542
      %1545 = dma.vmem_to_hbm [thread:$0]  %s1543, 128, %s6, [#allocation3]
    $region29: #{tpu_custom_call.1} parent=1 // pred_fallthru
      _
    // Predicated region
    $region30: #{tpu_custom_call.1} parent=1 // pred_check
      _
    $region31: #{tpu_custom_call.1} parent=1 // pred_check_branch
      %1547 = sbr.rel (0) target = $region33
    $region32: #{tpu_custom_call.1} parent=1 // pred_region
      %1548 = dma.done [#allocation3], 128
    $region33: #{tpu_custom_call.1} parent=1 // pred_fallthru
      _
    %1549 = vsyncpa [#allocation3], 1

</llo_original>
